<compile_context>
chip_gen: v6e
topology: v6e:2x2x1
jax: 0.10.0
libtpu: 0.0.40
codegen_flags: <defaults>
</compile_context>

<pallas_src>
import functools

import jax
import jax.numpy as jnp
from jax.experimental import pallas as pl
from jax.experimental.pallas import tpu as pltpu

LANE = 128
_VMEM = pl.BlockSpec(memory_space=pltpu.MemorySpace.VMEM)


# ---------------- Fused Pallas kernel ----------------------------------------

def _fused_mlp_kernel(x_ref, w1_ref, b1_ref, w2_ref, b2_ref,
                      w3_ref, b3_ref, w4_ref, b4_ref, o_ref):
    """Entire NeuralNet forward (eval mode) in one kernel.

    Each layer: h = relu(h @ W + b); BN has been pre-folded into the following
    layer's (W, b); dropout is identity at inference.  Matmuls hit the MXU in
    bf16 with f32 accumulation; epilogues stay f32.
    """
    h = jnp.dot(x_ref[...], w1_ref[...], preferred_element_type=jnp.float32)
    h = jnp.maximum(h + b1_ref[...], 0.0)

    h = jnp.dot(h.astype(w2_ref.dtype), w2_ref[...],
                preferred_element_type=jnp.float32)
    h = jnp.maximum(h + b2_ref[...], 0.0)

    h = jnp.dot(h.astype(w3_ref.dtype), w3_ref[...],
                preferred_element_type=jnp.float32)
    h = jnp.maximum(h + b3_ref[...], 0.0)

    y = jnp.dot(h.astype(w4_ref.dtype), w4_ref[...],
                preferred_element_type=jnp.float32)
    o_ref[...] = (y + b4_ref[...]).astype(o_ref.dtype)


@functools.partial(jax.jit, static_argnums=2)
def neuralnet_forward(x, folded, out_dim):
    batch = x.shape[0]
    out_pad = folded["w4"].shape[1]
    args = (
        x.astype(jnp.bfloat16),
        folded["w1"], folded["b1"],
        folded["w2"], folded["b2"],
        folded["w3"], folded["b3"],
        folded["w4"], folded["b4"],
    )
    out_padded = pl.pallas_call(
        _fused_mlp_kernel,
        out_shape=jax.ShapeDtypeStruct((batch, out_pad), jnp.float32),
        in_specs=[_VMEM] * len(args),
        out_specs=_VMEM,
    )(*args)
    return out_padded[:, :out_dim]


# ---------------- Parameter setup & BN folding (plain JAX glue) ---------------

def init_torch_like_params(key, input_size, hidden_size, output_size):
    """PyTorch-layout params: Linear weights (out, in), BN (gamma,beta,mean,var)."""
    def linear(k, fan_in, fan_out):
        kw, kb = jax.random.split(k)
        bound = 1.0 / jnp.sqrt(jnp.float32(fan_in))
        w = jax.random.uniform(kw, (fan_out, fan_in), jnp.float32, -bound, bound)
        b = jax.random.uniform(kb, (fan_out,), jnp.float32, -bound, bound)
        return w, b

    def bn(k, c):
        kg, kb, km, kv = jax.random.split(k, 4)
        gamma = 1.0 + 0.1 * jax.random.normal(kg, (c,), jnp.float32)
        beta = 0.1 * jax.random.normal(kb, (c,), jnp.float32)
        mean = 0.1 * jax.random.normal(km, (c,), jnp.float32)
        var = jnp.abs(1.0 + 0.1 * jax.random.normal(kv, (c,), jnp.float32))
        return gamma, beta, mean, var

    keys = jax.random.split(key, 7)
    return {
        "lin1": linear(keys[0], input_size, hidden_size),
        "bn1": bn(keys[1], hidden_size),
        "lin2": linear(keys[2], hidden_size, hidden_size),
        "bn2": bn(keys[3], hidden_size),
        "lin3": linear(keys[4], hidden_size, hidden_size),
        "bn3": bn(keys[5], hidden_size),
        "lin4": linear(keys[6], hidden_size, output_size),
    }


def fold_params(p, eps=1e-5, lane=LANE):
    """Fold eval-mode BN (which follows ReLU) into the next Linear; bf16 weights."""
    def bn_affine(bn_p):
        gamma, beta, mean, var = bn_p
        scale = gamma / jnp.sqrt(var + eps)
        shift = beta - mean * scale
        return scale, shift

    def fold_into_next(w_next, b_next, scale, shift):
        wt = w_next.T                       # (in, out)
        w_f = scale[:, None] * wt
        b_f = shift @ wt + b_next
        return w_f, b_f

    w1, b1 = p["lin1"]
    w1 = w1.T                               # (input, hidden)
    s1, t1 = bn_affine(p["bn1"])
    w2, b2 = fold_into_next(*p["lin2"], s1, t1)
    s2, t2 = bn_affine(p["bn2"])
    w3, b3 = fold_into_next(*p["lin3"], s2, t2)
    s3, t3 = bn_affine(p["bn3"])
    w4, b4 = fold_into_next(*p["lin4"], s3, t3)

    out_dim = int(w4.shape[1])
    pad = (-out_dim) % lane                 # lane-dense output (no masked stores)
    if pad:
        w4 = jnp.pad(w4, ((0, 0), (0, pad)))
        b4 = jnp.pad(b4, ((0, pad),))

    folded = dict(
        w1=w1.astype(jnp.bfloat16), b1=b1[None, :].astype(jnp.float32),
        w2=w2.astype(jnp.bfloat16), b2=b2[None, :].astype(jnp.float32),
        w3=w3.astype(jnp.bfloat16), b3=b3[None, :].astype(jnp.float32),
        w4=w4.astype(jnp.bfloat16), b4=b4[None, :].astype(jnp.float32),
    )
    return folded, out_dim


# ---------------- Pure-JAX reference (same folded bf16 params) ---------------

def reference_forward(x, folded, out_dim):
    def layer(h, w, b, relu=True):
        y = jnp.dot(h.astype(jnp.bfloat16), w,
                    preferred_element_type=jnp.float32) + b
        return jnp.maximum(y, 0.0) if relu else y

    h = layer(x, folded["w1"], folded["b1"])
    h = layer(h, folded["w2"], folded["b2"])
    h = layer(h, folded["w3"], folded["b3"])
    y = layer(h, folded["w4"], folded["b4"], relu=False)
    return y[:, :out_dim]


# ---------------- Demo --------------------------------------------------------

if __name__ == "__main__":
    # Small shapes consistent with the module (Linear in -> hidden x3 -> out).
    batch, input_size, hidden_size, output_size = 8, 128, 256, 8

    key = jax.random.PRNGKey(0)
    kx, kp = jax.random.split(key)
    x = jax.random.normal(kx, (batch, input_size), jnp.float32)

    torch_like = init_torch_like_params(kp, input_size, hidden_size, output_size)
    folded, out_dim = fold_params(torch_like)

    out = neuralnet_forward(x, folded, out_dim)
    jax.block_until_ready(out)
    assert out.shape == (batch, output_size)

    ref = reference_forward(x, folded, out_dim)
    assert jnp.allclose(out, ref, rtol=1e-2, atol=1e-2), "kernel/reference mismatch"

    # TODO(synk): training-mode Dropout(p=0.35) / BN batch-statistics are not
    # implemented (inference semantics only, matching model.eval()).
    print("KERNEL_OK")
</pallas_src>

<mosaic_0001>
module attributes {stable_mosaic.version = 11 : i64} {
  func.func @_fused_mlp_kernel(%arg0: memref<8x128xbf16, #tpu.memory_space<vmem>>, %arg1: memref<128x256xbf16, #tpu.memory_space<vmem>>, %arg2: memref<1x256xf32, #tpu.memory_space<vmem>>, %arg3: memref<256x256xbf16, #tpu.memory_space<vmem>>, %arg4: memref<1x256xf32, #tpu.memory_space<vmem>>, %arg5: memref<256x256xbf16, #tpu.memory_space<vmem>>, %arg6: memref<1x256xf32, #tpu.memory_space<vmem>>, %arg7: memref<256x128xbf16, #tpu.memory_space<vmem>>, %arg8: memref<1x128xf32, #tpu.memory_space<vmem>>, %arg9: memref<8x128xf32, #tpu.memory_space<vmem>>) attributes {dimension_semantics = [], scalar_prefetch = 0 : i64, scratch_operands = 0 : i64, tpu.core_type = #tpu.core_type<tc>} {
    %c0 = arith.constant 0 : index
    %c0_0 = arith.constant 0 : index
    %0 = vector.load %arg0[%c0, %c0_0] : memref<8x128xbf16, #tpu.memory_space<vmem>>, vector<8x128xbf16>
    %c0_1 = arith.constant 0 : index
    %c0_2 = arith.constant 0 : index
    %1 = vector.load %arg1[%c0_1, %c0_2] : memref<128x256xbf16, #tpu.memory_space<vmem>>, vector<128x256xbf16>
    %cst = arith.constant dense<0.000000e+00> : vector<8x256xf32>
    %2 = tpu.matmul %0, %1, %cst {dimension_numbers = #tpu.dot_dimension_numbers<[1], [0], [0], [1], [0, 0, 1, 1], [], []>} : vector<8x128xbf16>, vector<128x256xbf16>, vector<8x256xf32> -> vector<8x256xf32>
    %c0_3 = arith.constant 0 : index
    %c0_4 = arith.constant 0 : index
    %3 = vector.load %arg2[%c0_3, %c0_4] : memref<1x256xf32, #tpu.memory_space<vmem>>, vector<1x256xf32>
    %4 = vector.broadcast %3 : vector<1x256xf32> to vector<8x256xf32>
    %5 = arith.addf %2, %4 : vector<8x256xf32>
    %cst_5 = arith.constant 0.000000e+00 : f32
    %6 = vector.broadcast %cst_5 : f32 to vector<8x256xf32>
    %7 = arith.maximumf %5, %6 : vector<8x256xf32>
    %8 = arith.truncf %7 : vector<8x256xf32> to vector<8x256xbf16>
    %c0_6 = arith.constant 0 : index
    %c0_7 = arith.constant 0 : index
    %9 = vector.load %arg3[%c0_6, %c0_7] : memref<256x256xbf16, #tpu.memory_space<vmem>>, vector<256x256xbf16>
    %cst_8 = arith.constant dense<0.000000e+00> : vector<8x256xf32>
    %10 = tpu.matmul %8, %9, %cst_8 {dimension_numbers = #tpu.dot_dimension_numbers<[1], [0], [0], [1], [0, 0, 1, 1], [], []>} : vector<8x256xbf16>, vector<256x256xbf16>, vector<8x256xf32> -> vector<8x256xf32>
    %c0_9 = arith.constant 0 : index
    %c0_10 = arith.constant 0 : index
    %11 = vector.load %arg4[%c0_9, %c0_10] : memref<1x256xf32, #tpu.memory_space<vmem>>, vector<1x256xf32>
    %12 = vector.broadcast %11 : vector<1x256xf32> to vector<8x256xf32>
    %13 = arith.addf %10, %12 : vector<8x256xf32>
    %cst_11 = arith.constant 0.000000e+00 : f32
    %14 = vector.broadcast %cst_11 : f32 to vector<8x256xf32>
    %15 = arith.maximumf %13, %14 : vector<8x256xf32>
    %16 = arith.truncf %15 : vector<8x256xf32> to vector<8x256xbf16>
    %c0_12 = arith.constant 0 : index
    %c0_13 = arith.constant 0 : index
    %17 = vector.load %arg5[%c0_12, %c0_13] : memref<256x256xbf16, #tpu.memory_space<vmem>>, vector<256x256xbf16>
    %cst_14 = arith.constant dense<0.000000e+00> : vector<8x256xf32>
    %18 = tpu.matmul %16, %17, %cst_14 {dimension_numbers = #tpu.dot_dimension_numbers<[1], [0], [0], [1], [0, 0, 1, 1], [], []>} : vector<8x256xbf16>, vector<256x256xbf16>, vector<8x256xf32> -> vector<8x256xf32>
    %c0_15 = arith.constant 0 : index
    %c0_16 = arith.constant 0 : index
    %19 = vector.load %arg6[%c0_15, %c0_16] : memref<1x256xf32, #tpu.memory_space<vmem>>, vector<1x256xf32>
    %20 = vector.broadcast %19 : vector<1x256xf32> to vector<8x256xf32>
    %21 = arith.addf %18, %20 : vector<8x256xf32>
    %cst_17 = arith.constant 0.000000e+00 : f32
    %22 = vector.broadcast %cst_17 : f32 to vector<8x256xf32>
    %23 = arith.maximumf %21, %22 : vector<8x256xf32>
    %24 = arith.truncf %23 : vector<8x256xf32> to vector<8x256xbf16>
    %c0_18 = arith.constant 0 : index
    %c0_19 = arith.constant 0 : index
    %25 = vector.load %arg7[%c0_18, %c0_19] : memref<256x128xbf16, #tpu.memory_space<vmem>>, vector<256x128xbf16>
    %cst_20 = arith.constant dense<0.000000e+00> : vector<8x128xf32>
    %26 = tpu.matmul %24, %25, %cst_20 {dimension_numbers = #tpu.dot_dimension_numbers<[1], [0], [0], [1], [0, 0, 1, 1], [], []>} : vector<8x256xbf16>, vector<256x128xbf16>, vector<8x128xf32> -> vector<8x128xf32>
    %c0_21 = arith.constant 0 : index
    %c0_22 = arith.constant 0 : index
    %27 = vector.load %arg8[%c0_21, %c0_22] : memref<1x128xf32, #tpu.memory_space<vmem>>, vector<1x128xf32>
    %28 = vector.broadcast %27 : vector<1x128xf32> to vector<8x128xf32>
    %29 = arith.addf %26, %28 : vector<8x128xf32>
    %c0_23 = arith.constant 0 : index
    %c0_24 = arith.constant 0 : index
    %30 = vector.load %arg9[%c0_23, %c0_24] : memref<8x128xf32, #tpu.memory_space<vmem>>, vector<8x128xf32>
    tpu.vector_store %arg9[%c0_23, %c0_24], %29 {strides = array<i32>} : memref<8x128xf32, #tpu.memory_space<vmem>>, vector<8x128xf32>,
    return
  }
}

</mosaic_0001>

<llo_original>
// kernel: neuralnet_forward.1
$region0: #{neuralnet_forward.1}
  #allocation0 [shape = 'u32[]', space=smem, size = 0x4, offset = 0x4, fixed_abs, tag = 'smem constant byte address 0x4 - core index']
  #allocation1 [shape = 'u32[144,128]{1,0:T(1,128)}', space=vmem, size = 0x12000, scoped, tag = 'internal scratch']
  %s0 = inlined_call_operand.vmem [shape: bf16[8,128], index: 0, kind: input, shape index: {}]
  %s1 = inlined_call_operand.hbm [shape: bf16[128,256], index: 1, kind: input, shape index: {}]
  %s2 = inlined_call_operand.vmem [shape: f32[1,256], index: 2, kind: input, shape index: {}]
  %s3 = inlined_call_operand.hbm [shape: bf16[256,256], index: 3, kind: input, shape index: {}]
  %s4 = inlined_call_operand.vmem [shape: f32[1,256], index: 4, kind: input, shape index: {}]
  %s5 = inlined_call_operand.hbm [shape: bf16[256,256], index: 5, kind: input, shape index: {}]
  %s6 = inlined_call_operand.vmem [shape: f32[1,256], index: 6, kind: input, shape index: {}]
  %s7 = inlined_call_operand.hbm [shape: bf16[256,128], index: 7, kind: input, shape index: {}]
  %s8 = inlined_call_operand.vmem [shape: f32[1,128], index: 8, kind: input, shape index: {}]
  %s9 = inlined_call_operand.hbm [shape: f32[8,128], index: 9, kind: output, shape index: {}]
  %s10 = sld [smem:[#allocation0]]
  $region62: #{neuralnet_forward.1} parent=0
    _
  %s12 = ssub.s32 1, %s10
  %s13 = scalar_select 0, %s12, %s10
  $region1: #{neuralnet_forward.1} parent=0
    #allocation2 [shape = 'u8[65536]{0}', space=vmem, size = 0x10000, scoped, tag = 'input window, operand 1, single buffered']
    #allocation3 [shape = 's32[1]{0}', space=sflag, size = 0x4, scoped, tag = 'scoped memory for neuralnet_forward.1']
    #allocation4 [shape = 's32[1]{0}', space=sflag, size = 0x4, scoped, tag = 'scoped memory for neuralnet_forward.1']
    #allocation5 [shape = 'u8[131072]{0}', space=vmem, size = 0x20000, scoped, tag = 'input window, operand 3, single buffered']
    #allocation6 [shape = 's32[1]{0}', space=sflag, size = 0x4, scoped, tag = 'scoped memory for neuralnet_forward.1']
    #allocation7 [shape = 'u8[131072]{0}', space=vmem, size = 0x20000, scoped, tag = 'input window, operand 5, single buffered']
    #allocation8 [shape = 'u8[65536]{0}', space=vmem, size = 0x10000, scoped, tag = 'input window, operand 7, single buffered']
    #allocation9 [shape = 's32[1]{0}', space=sflag, size = 0x4, scoped, tag = 'scoped memory for neuralnet_forward.1']
    #allocation10 [shape = 'u8[4096]{0}', space=vmem, size = 0x1000, scoped, tag = 'output window, operand 0, single buffered']
    %14 = vsyncpa [#allocation3], 0
    %15 = vsyncpa [#allocation6], 0
    %16 = vsyncpa [#allocation9], 0
    %17 = vsyncpa [#allocation4], 0
    // Predicated region
    $region2: #{neuralnet_forward.1} parent=1 // pred_check
      _
    $region3: #{neuralnet_forward.1} parent=1 // pred_check_branch
      %19 = sbr.rel (0) target = $region5
    $region4: #{neuralnet_forward.1} parent=1 // pred_region
      _
    $region5: #{neuralnet_forward.1} parent=1 // pred_fallthru
      _
    // Predicated region
    $region6: #{neuralnet_forward.1} parent=1 // pred_check
      _
    $region7: #{neuralnet_forward.1} parent=1 // pred_check_branch
      %21 = sbr.rel (0) target = $region9
    $region8: #{neuralnet_forward.1} parent=1 // pred_region
      %s23 = ssub.s32 2048, 2048
      %24 = vsyncadd [#allocation3], %s23
      %s25 = sshll.u32 [#allocation2], 4
      %s26 = int_to_ptr.vmem [resolvable:$true] %s25
      %31 = dma.hbm_to_vmem [thread:$0]  %s1, 2048, %s26, [#allocation3], 128, 128, 8
    $region9: #{neuralnet_forward.1} parent=1 // pred_fallthru
      _
    // Predicated region
    $region10: #{neuralnet_forward.1} parent=1 // pred_check
      _
    $region11: #{neuralnet_forward.1} parent=1 // pred_check_branch
      %33 = sbr.rel (0) target = $region13
    $region12: #{neuralnet_forward.1} parent=1 // pred_region
      _
    $region13: #{neuralnet_forward.1} parent=1 // pred_fallthru
      _
    // Predicated region
    $region14: #{neuralnet_forward.1} parent=1 // pred_check
      _
    $region15: #{neuralnet_forward.1} parent=1 // pred_check_branch
      %35 = sbr.rel (0) target = $region17
    $region16: #{neuralnet_forward.1} parent=1 // pred_region
      %s37 = ssub.s32 4096, 4096
      %38 = vsyncadd [#allocation6], %s37
      %s39 = sshll.u32 [#allocation5], 4
      %s40 = int_to_ptr.vmem [resolvable:$true] %s39
      %45 = dma.hbm_to_vmem [thread:$0]  %s3, 4096, %s40, [#allocation6], 128, 128, 8
    $region17: #{neuralnet_forward.1} parent=1 // pred_fallthru
      _
    // Predicated region
    $region18: #{neuralnet_forward.1} parent=1 // pred_check
      _
    $region19: #{neuralnet_forward.1} parent=1 // pred_check_branch
      %47 = sbr.rel (0) target = $region21
    $region20: #{neuralnet_forward.1} parent=1 // pred_region
      _
    $region21: #{neuralnet_forward.1} parent=1 // pred_fallthru
      _
    // Predicated region
    $region22: #{neuralnet_forward.1} parent=1 // pred_check
      _
    $region23: #{neuralnet_forward.1} parent=1 // pred_check_branch
      %49 = sbr.rel (0) target = $region25
    $region24: #{neuralnet_forward.1} parent=1 // pred_region
      %s51 = ssub.s32 4096, 4096
      %52 = vsyncadd [#allocation6], %s51
      %s53 = sshll.u32 [#allocation7], 4
      %s54 = int_to_ptr.vmem [resolvable:$true] %s53
      %59 = dma.hbm_to_vmem [thread:$0]  %s5, 4096, %s54, [#allocation6], 128, 128, 8
    $region25: #{neuralnet_forward.1} parent=1 // pred_fallthru
      _
    // Predicated region
    $region26: #{neuralnet_forward.1} parent=1 // pred_check
      _
    $region27: #{neuralnet_forward.1} parent=1 // pred_check_branch
      %61 = sbr.rel (0) target = $region29
    $region28: #{neuralnet_forward.1} parent=1 // pred_region
      _
    $region29: #{neuralnet_forward.1} parent=1 // pred_fallthru
      _
    // Predicated region
    $region30: #{neuralnet_forward.1} parent=1 // pred_check
      _
    $region31: #{neuralnet_forward.1} parent=1 // pred_check_branch
      %63 = sbr.rel (0) target = $region33
    $region32: #{neuralnet_forward.1} parent=1 // pred_region
      %s65 = ssub.s32 2048, 2048
      %66 = vsyncadd [#allocation9], %s65
      %s67 = sshll.u32 [#allocation8], 4
      %s68 = int_to_ptr.vmem [resolvable:$true] %s67
      %73 = dma.hbm_to_vmem [thread:$0]  %s7, 2048, %s68, [#allocation9], 64, 64, 4
    $region33: #{neuralnet_forward.1} parent=1 // pred_fallthru
      _
    // Predicated region
    $region34: #{neuralnet_forward.1} parent=1 // pred_check
      _
    $region35: #{neuralnet_forward.1} parent=1 // pred_check_branch
      %75 = sbr.rel (0) target = $region37
    $region36: #{neuralnet_forward.1} parent=1 // pred_region
      _
    $region37: #{neuralnet_forward.1} parent=1 // pred_fallthru
      _
    // Predicated region
    $region38: #{neuralnet_forward.1} parent=1 // pred_check
      _
    $region39: #{neuralnet_forward.1} parent=1 // pred_check_branch
      %77 = sbr.rel (0) target = $region41
    $region40: #{neuralnet_forward.1} parent=1 // pred_region
      %78 = dma.done [#allocation3], 2048
    $region41: #{neuralnet_forward.1} parent=1 // pred_fallthru
      _
    // Predicated region
    $region42: #{neuralnet_forward.1} parent=1 // pred_check
      _
    $region43: #{neuralnet_forward.1} parent=1 // pred_check_branch
      %80 = sbr.rel (0) target = $region45
    $region44: #{neuralnet_forward.1} parent=1 // pred_region
      %81 = dma.done [#allocation6], 4096
    $region45: #{neuralnet_forward.1} parent=1 // pred_fallthru
      _
    // Predicated region
    $region46: #{neuralnet_forward.1} parent=1 // pred_check
      _
    $region47: #{neuralnet_forward.1} parent=1 // pred_check_branch
      %83 = sbr.rel (0) target = $region49
    $region48: #{neuralnet_forward.1} parent=1 // pred_region
      %84 = dma.done [#allocation6], 4096
    $region49: #{neuralnet_forward.1} parent=1 // pred_fallthru
      _
    // Predicated region
    $region50: #{neuralnet_forward.1} parent=1 // pred_check
      _
    $region51: #{neuralnet_forward.1} parent=1 // pred_check_branch
      %86 = sbr.rel (0) target = $region53
    $region52: #{neuralnet_forward.1} parent=1 // pred_region
      %87 = dma.done [#allocation9], 2048
    $region53: #{neuralnet_forward.1} parent=1 // pred_fallthru
      _
    %v89 = vld [vmem:[%s0] sm:$0xf]
    %v90 = vld [vmem:[#allocation2] sm:$0xff]
    %v91 = vld [vmem:[#allocation2 + $0x8] sm:$0xff]
    %v92 = vld [vmem:[#allocation2 + $0x10] sm:$0xff]
    %v93 = vld [vmem:[#allocation2 + $0x18] sm:$0xff]
    %v94 = vld [vmem:[#allocation2 + $0x20] sm:$0xff]
    %v95 = vld [vmem:[#allocation2 + $0x28] sm:$0xff]
    %v96 = vld [vmem:[#allocation2 + $0x30] sm:$0xff]
    %v97 = vld [vmem:[#allocation2 + $0x38] sm:$0xff]
    %v98 = vld [vmem:[#allocation2 + $0x40] sm:$0xff]
    %v99 = vld [vmem:[#allocation2 + $0x48] sm:$0xff]
    %v100 = vld [vmem:[#allocation2 + $0x50] sm:$0xff]
    %v101 = vld [vmem:[#allocation2 + $0x58] sm:$0xff]
    %v102 = vld [vmem:[#allocation2 + $0x60] sm:$0xff]
    %v103 = vld [vmem:[#allocation2 + $0x68] sm:$0xff]
    %v104 = vld [vmem:[#allocation2 + $0x70] sm:$0xff]
    %v105 = vld [vmem:[#allocation2 + $0x78] sm:$0xff]
    %v106 = vld [vmem:[%s2] sm:$0x3]
    %v108 = vlaneseq
    %v109 = vshrl.u32 %v108, 7
    %v110 = vsub.s32 0, %v109
    %v111 = vrot.slane %v106, %v110
    %v112 = vlaneseq
    %v113 = vshrl.u32 %v112, 7
    %v114 = vsub.s32 1, %v113
    %v115 = vrot.slane %v106, %v114
    %v134 = vunpack.c.l.b16 %v90
    %v135 = vunpack.c.h.b16 %v90
    %v136 = vunpack.c.l.b16 %v91
    %v137 = vunpack.c.h.b16 %v91
    %v138 = vunpack.c.l.b16 %v92
    %v139 = vunpack.c.h.b16 %v92
    %v140 = vunpack.c.l.b16 %v93
    %v141 = vunpack.c.h.b16 %v93
    %v142 = vunpack.c.l.b16 %v94
    %v143 = vunpack.c.h.b16 %v94
    %v144 = vunpack.c.l.b16 %v95
    %v145 = vunpack.c.h.b16 %v95
    %v146 = vunpack.c.l.b16 %v96
    %v147 = vunpack.c.h.b16 %v96
    %v148 = vunpack.c.l.b16 %v97
    %v149 = vunpack.c.h.b16 %v97
    %v150 = vunpack.c.l.b16 %v98
    %v151 = vunpack.c.h.b16 %v98
    %v152 = vunpack.c.l.b16 %v99
    %v153 = vunpack.c.h.b16 %v99
    %v154 = vunpack.c.l.b16 %v100
    %v155 = vunpack.c.h.b16 %v100
    %v156 = vunpack.c.l.b16 %v101
    %v157 = vunpack.c.h.b16 %v101
    %v158 = vunpack.c.l.b16 %v102
    %v159 = vunpack.c.h.b16 %v102
    %v160 = vunpack.c.l.b16 %v103
    %v161 = vunpack.c.h.b16 %v103
    %v162 = vunpack.c.l.b16 %v104
    %v163 = vunpack.c.h.b16 %v104
    %v164 = vunpack.c.l.b16 %v105
    %v165 = vunpack.c.h.b16 %v105
    %v166 = vpack.c.b16 %v136, %v134
    %v167 = vpack.c.b16 %v137, %v135
    %v168 = vpack.c.b16 %v140, %v138
    %v169 = vpack.c.b16 %v141, %v139
    %v170 = vpack.c.b16 %v144, %v142
    %v171 = vpack.c.b16 %v145, %v143
    %v172 = vpack.c.b16 %v148, %v146
    %v173 = vpack.c.b16 %v149, %v147
    %v174 = vpack.c.b16 %v152, %v150
    %v175 = vpack.c.b16 %v153, %v151
    %v176 = vpack.c.b16 %v156, %v154
    %v177 = vpack.c.b16 %v157, %v155
    %v178 = vpack.c.b16 %v160, %v158
    %v179 = vpack.c.b16 %v161, %v159
    %v180 = vpack.c.b16 %v164, %v162
    %v181 = vpack.c.b16 %v165, %v163
    %198 = vmatprep.subr.bf16.mxu0 %v181
    %199 = vmatpush1.bf16.msra.mxu0 %v180
    %200 = vmatprep.subr.bf16.mxu0 %v179
    %201 = vmatpush1.bf16.msra.mxu0 %v178
    %202 = vmatprep.subr.bf16.mxu0 %v177
    %203 = vmatpush1.bf16.msra.mxu0 %v176
    %204 = vmatprep.subr.bf16.mxu0 %v175
    %205 = vmatpush1.bf16.msra.mxu0 %v174
    %206 = vmatprep.subr.bf16.mxu0 %v173
    %207 = vmatpush1.bf16.msra.mxu0 %v172
    %208 = vmatprep.subr.bf16.mxu0 %v171
    %209 = vmatpush1.bf16.msra.mxu0 %v170
    %210 = vmatprep.subr.bf16.mxu0 %v169
    %211 = vmatpush1.bf16.msra.mxu0 %v168
    %212 = vmatprep.subr.bf16.mxu0 %v167
    %213 = vmatpush1.bf16.msra.mxu0 %v166
    %214 = vmatprep.subr.bf16.mxu0 0
    %215 = vmatpush2.bf16.msra.mxu0 0
    %216 = vmatprep.subr.bf16.mxu0 0
    %217 = vmatpush2.bf16.msra.mxu0 0
    %218 = vmatprep.subr.bf16.mxu0 0
    %219 = vmatpush2.bf16.msra.mxu0 0
    %220 = vmatprep.subr.bf16.mxu0 0
    %221 = vmatpush2.bf16.msra.mxu0 0
    %222 = vmatprep.subr.bf16.mxu0 0
    %223 = vmatpush2.bf16.msra.mxu0 0
    %224 = vmatprep.subr.bf16.mxu0 0
    %225 = vmatpush2.bf16.msra.mxu0 0
    %226 = vmatprep.subr.bf16.mxu0 0
    %227 = vmatpush2.bf16.msra.mxu0 0
    %228 = vmatprep.subr.bf16.mxu0 0
    %229 = vmatpush2.bf16.msra.mxu0 0
    %230 = vmatprep.mubr.bf16.mxu0 0
    %231 = vmatmul.mubr.bf16.gmra.mxu0 %v89
    %v232 = vpop.f32.mrf.mxu0
    %v233 = vadd.f32 %v111, %v232
    %v234 = vpop.f32.mrf.mxu0
    %v235 = vadd.f32 %v115, %v234
    %v236 = vpop.f32.mrf.mxu0
    %v237 = vpop.f32.mrf.mxu0
    %238 = vdwg.mxu0
    %v239 = vmax.f32 %v233, 0.0
    %v240 = vmax.f32 %v235, 0.0
    %v241 = vpack.c.bf16 %v239, %v239
    %v242 = vpack.c.bf16 %v240, %v240
    %v243 = vld [vmem:[#allocation5] sm:$0xff]
    %v244 = vld [vmem:[#allocation5 + $0x8] sm:$0xff]
    %v245 = vld [vmem:[#allocation5 + $0x10] sm:$0xff]
    %v246 = vld [vmem:[#allocation5 + $0x18] sm:$0xff]
    %v247 = vld [vmem:[#allocation5 + $0x20] sm:$0xff]
    %v248 = vld [vmem:[#allocation5 + $0x28] sm:$0xff]
    %v249 = vld [vmem:[#allocation5 + $0x30] sm:$0xff]
    %v250 = vld [vmem:[#allocation5 + $0x38] sm:$0xff]
    %v251 = vld [vmem:[#allocation5 + $0x40] sm:$0xff]
    %v252 = vld [vmem:[#allocation5 + $0x48] sm:$0xff]
    %v253 = vld [vmem:[#allocation5 + $0x50] sm:$0xff]
    %v254 = vld [vmem:[#allocation5 + $0x58] sm:$0xff]
    %v255 = vld [vmem:[#allocation5 + $0x60] sm:$0xff]
    %v256 = vld [vmem:[#allocation5 + $0x68] sm:$0xff]
    %v257 = vld [vmem:[#allocation5 + $0x70] sm:$0xff]
    %v258 = vld [vmem:[#allocation5 + $0x78] sm:$0xff]
    %v259 = vld [vmem:[#allocation5 + $0x80] sm:$0xff]
    %v260 = vld [vmem:[#allocation5 + $0x88] sm:$0xff]
    %v261 = vld [vmem:[#allocation5 + $0x90] sm:$0xff]
    %v262 = vld [vmem:[#allocation5 + $0x98] sm:$0xff]
    %v263 = vld [vmem:[#allocation5 + $0xa0] sm:$0xff]
    %v264 = vld [vmem:[#allocation5 + $0xa8] sm:$0xff]
    %v265 = vld [vmem:[#allocation5 + $0xb0] sm:$0xff]
    %v266 = vld [vmem:[#allocation5 + $0xb8] sm:$0xff]
    %v267 = vld [vmem:[#allocation5 + $0xc0] sm:$0xff]
    %v268 = vld [vmem:[#allocation5 + $0xc8] sm:$0xff]
    %v269 = vld [vmem:[#allocation5 + $0xd0] sm:$0xff]
    %v270 = vld [vmem:[#allocation5 + $0xd8] sm:$0xff]
    %v271 = vld [vmem:[#allocation5 + $0xe0] sm:$0xff]
    %v272 = vld [vmem:[#allocation5 + $0xe8] sm:$0xff]
    %v273 = vld [vmem:[#allocation5 + $0xf0] sm:$0xff]
    %v274 = vld [vmem:[#allocation5 + $0xf8] sm:$0xff]
    %v275 = vld [vmem:[%s4] sm:$0x3]
    %v277 = vlaneseq
    %v278 = vshrl.u32 %v277, 7
    %v279 = vsub.s32 0, %v278
    %v280 = vrot.slane %v275, %v279
    %v281 = vlaneseq
    %v282 = vshrl.u32 %v281, 7
    %v283 = vsub.s32 1, %v282
    %v284 = vrot.slane %v275, %v283
    %v319 = vunpack.c.l.b16 %v243
    %v320 = vunpack.c.h.b16 %v243
    %v321 = vunpack.c.l.b16 %v244
    %v322 = vunpack.c.h.b16 %v244
    %v323 = vunpack.c.l.b16 %v245
    %v324 = vunpack.c.h.b16 %v245
    %v325 = vunpack.c.l.b16 %v246
    %v326 = vunpack.c.h.b16 %v246
    %v327 = vunpack.c.l.b16 %v247
    %v328 = vunpack.c.h.b16 %v247
    %v329 = vunpack.c.l.b16 %v248
    %v330 = vunpack.c.h.b16 %v248
    %v331 = vunpack.c.l.b16 %v249
    %v332 = vunpack.c.h.b16 %v249
    %v333 = vunpack.c.l.b16 %v250
    %v334 = vunpack.c.h.b16 %v250
    %v335 = vunpack.c.l.b16 %v251
    %v336 = vunpack.c.h.b16 %v251
    %v337 = vunpack.c.l.b16 %v252
    %v338 = vunpack.c.h.b16 %v252
    %v339 = vunpack.c.l.b16 %v253
    %v340 = vunpack.c.h.b16 %v253
    %v341 = vunpack.c.l.b16 %v254
    %v342 = vunpack.c.h.b16 %v254
    %v343 = vunpack.c.l.b16 %v255
    %v344 = vunpack.c.h.b16 %v255
    %v345 = vunpack.c.l.b16 %v256
    %v346 = vunpack.c.h.b16 %v256
    %v347 = vunpack.c.l.b16 %v257
    %v348 = vunpack.c.h.b16 %v257
    %v349 = vunpack.c.l.b16 %v258
    %v350 = vunpack.c.h.b16 %v258
    %v351 = vunpack.c.l.b16 %v259
    %v352 = vunpack.c.h.b16 %v259
    %v353 = vunpack.c.l.b16 %v260
    %v354 = vunpack.c.h.b16 %v260
    %v355 = vunpack.c.l.b16 %v261
    %v356 = vunpack.c.h.b16 %v261
    %v357 = vunpack.c.l.b16 %v262
    %v358 = vunpack.c.h.b16 %v262
    %v359 = vunpack.c.l.b16 %v263
    %v360 = vunpack.c.h.b16 %v263
    %v361 = vunpack.c.l.b16 %v264
    %v362 = vunpack.c.h.b16 %v264
    %v363 = vunpack.c.l.b16 %v265
    %v364 = vunpack.c.h.b16 %v265
    %v365 = vunpack.c.l.b16 %v266
    %v366 = vunpack.c.h.b16 %v266
    %v367 = vunpack.c.l.b16 %v267
    %v368 = vunpack.c.h.b16 %v267
    %v369 = vunpack.c.l.b16 %v268
    %v370 = vunpack.c.h.b16 %v268
    %v371 = vunpack.c.l.b16 %v269
    %v372 = vunpack.c.h.b16 %v269
    %v373 = vunpack.c.l.b16 %v270
    %v374 = vunpack.c.h.b16 %v270
    %v375 = vunpack.c.l.b16 %v271
    %v376 = vunpack.c.h.b16 %v271
    %v377 = vunpack.c.l.b16 %v272
    %v378 = vunpack.c.h.b16 %v272
    %v379 = vunpack.c.l.b16 %v273
    %v380 = vunpack.c.h.b16 %v273
    %v381 = vunpack.c.l.b16 %v274
    %v382 = vunpack.c.h.b16 %v274
    %v383 = vpack.c.b16 %v321, %v319
    %v384 = vpack.c.b16 %v322, %v320
    %v385 = vpack.c.b16 %v325, %v323
    %v386 = vpack.c.b16 %v326, %v324
    %v387 = vpack.c.b16 %v329, %v327
    %v388 = vpack.c.b16 %v330, %v328
    %v389 = vpack.c.b16 %v333, %v331
    %v390 = vpack.c.b16 %v334, %v332
    %v391 = vpack.c.b16 %v337, %v335
    %v392 = vpack.c.b16 %v338, %v336
    %v393 = vpack.c.b16 %v341, %v339
    %v394 = vpack.c.b16 %v342, %v340
    %v395 = vpack.c.b16 %v345, %v343
    %v396 = vpack.c.b16 %v346, %v344
    %v397 = vpack.c.b16 %v349, %v347
    %v398 = vpack.c.b16 %v350, %v348
    %v399 = vpack.c.b16 %v353, %v351
    %v400 = vpack.c.b16 %v354, %v352
    %v401 = vpack.c.b16 %v357, %v355
    %v402 = vpack.c.b16 %v358, %v356
    %v403 = vpack.c.b16 %v361, %v359
    %v404 = vpack.c.b16 %v362, %v360
    %v405 = vpack.c.b16 %v365, %v363
    %v406 = vpack.c.b16 %v366, %v364
    %v407 = vpack.c.b16 %v369, %v367
    %v408 = vpack.c.b16 %v370, %v368
    %v409 = vpack.c.b16 %v373, %v371
    %v410 = vpack.c.b16 %v374, %v372
    %v411 = vpack.c.b16 %v377, %v375
    %v412 = vpack.c.b16 %v378, %v376
    %v413 = vpack.c.b16 %v381, %v379
    %v414 = vpack.c.b16 %v382, %v380
    %447 = vmatprep.subr.bf16.mxu0 %v398
    %448 = vmatpush1.bf16.msra.mxu0 %v397
    %449 = vmatprep.subr.bf16.mxu0 %v396
    %450 = vmatpush1.bf16.msra.mxu0 %v395
    %451 = vmatprep.subr.bf16.mxu0 %v394
    %452 = vmatpush1.bf16.msra.mxu0 %v393
    %453 = vmatprep.subr.bf16.mxu0 %v392
    %454 = vmatpush1.bf16.msra.mxu0 %v391
    %455 = vmatprep.subr.bf16.mxu0 %v390
    %456 = vmatpush1.bf16.msra.mxu0 %v389
    %457 = vmatprep.subr.bf16.mxu0 %v388
    %458 = vmatpush1.bf16.msra.mxu0 %v387
    %459 = vmatprep.subr.bf16.mxu0 %v386
    %460 = vmatpush1.bf16.msra.mxu0 %v385
    %461 = vmatprep.subr.bf16.mxu0 %v384
    %462 = vmatpush1.bf16.msra.mxu0 %v383
    %463 = vmatprep.subr.bf16.mxu0 %v414
    %464 = vmatpush2.bf16.msra.mxu0 %v413
    %465 = vmatprep.subr.bf16.mxu0 %v412
    %466 = vmatpush2.bf16.msra.mxu0 %v411
    %467 = vmatprep.subr.bf16.mxu0 %v410
    %468 = vmatpush2.bf16.msra.mxu0 %v409
    %469 = vmatprep.subr.bf16.mxu0 %v408
    %470 = vmatpush2.bf16.msra.mxu0 %v407
    %471 = vmatprep.subr.bf16.mxu0 %v406
    %472 = vmatpush2.bf16.msra.mxu0 %v405
    %473 = vmatprep.subr.bf16.mxu0 %v404
    %474 = vmatpush2.bf16.msra.mxu0 %v403
    %475 = vmatprep.subr.bf16.mxu0 %v402
    %476 = vmatpush2.bf16.msra.mxu0 %v401
    %477 = vmatprep.subr.bf16.mxu0 %v400
    %478 = vmatpush2.bf16.msra.mxu0 %v399
    %479 = vmatprep.mubr.bf16.mxu0 %v242
    %480 = vmatmul.mubr.bf16.gmra.mxu0 %v241
    %v481 = vpop.f32.mrf.mxu0
    %v482 = vadd.f32 %v280, %v481
    %v483 = vpop.f32.mrf.mxu0
    %v484 = vadd.f32 %v284, %v483
    %v485 = vpop.f32.mrf.mxu0
    %v486 = vpop.f32.mrf.mxu0
    %487 = vdwg.mxu0
    %v488 = vmax.f32 %v482, 0.0
    %v489 = vmax.f32 %v484, 0.0
    %v490 = vpack.c.bf16 %v488, %v488
    %v491 = vpack.c.bf16 %v489, %v489
    %v492 = vld [vmem:[#allocation7] sm:$0xff]
    %v493 = vld [vmem:[#allocation7 + $0x8] sm:$0xff]
    %v494 = vld [vmem:[#allocation7 + $0x10] sm:$0xff]
    %v495 = vld [vmem:[#allocation7 + $0x18] sm:$0xff]
    %v496 = vld [vmem:[#allocation7 + $0x20] sm:$0xff]
    %v497 = vld [vmem:[#allocation7 + $0x28] sm:$0xff]
    %v498 = vld [vmem:[#allocation7 + $0x30] sm:$0xff]
    %v499 = vld [vmem:[#allocation7 + $0x38] sm:$0xff]
    %v500 = vld [vmem:[#allocation7 + $0x40] sm:$0xff]
    %v501 = vld [vmem:[#allocation7 + $0x48] sm:$0xff]
    %v502 = vld [vmem:[#allocation7 + $0x50] sm:$0xff]
    %v503 = vld [vmem:[#allocation7 + $0x58] sm:$0xff]
    %v504 = vld [vmem:[#allocation7 + $0x60] sm:$0xff]
    %v505 = vld [vmem:[#allocation7 + $0x68] sm:$0xff]
    %v506 = vld [vmem:[#allocation7 + $0x70] sm:$0xff]
    %v507 = vld [vmem:[#allocation7 + $0x78] sm:$0xff]
    %v508 = vld [vmem:[#allocation7 + $0x80] sm:$0xff]
    %v509 = vld [vmem:[#allocation7 + $0x88] sm:$0xff]
    %v510 = vld [vmem:[#allocation7 + $0x90] sm:$0xff]
    %v511 = vld [vmem:[#allocation7 + $0x98] sm:$0xff]
    %v512 = vld [vmem:[#allocation7 + $0xa0] sm:$0xff]
    %v513 = vld [vmem:[#allocation7 + $0xa8] sm:$0xff]
    %v514 = vld [vmem:[#allocation7 + $0xb0] sm:$0xff]
    %v515 = vld [vmem:[#allocation7 + $0xb8] sm:$0xff]
    %v516 = vld [vmem:[#allocation7 + $0xc0] sm:$0xff]
    %v517 = vld [vmem:[#allocation7 + $0xc8] sm:$0xff]
    %v518 = vld [vmem:[#allocation7 + $0xd0] sm:$0xff]
    %v519 = vld [vmem:[#allocation7 + $0xd8] sm:$0xff]
    %v520 = vld [vmem:[#allocation7 + $0xe0] sm:$0xff]
    %v521 = vld [vmem:[#allocation7 + $0xe8] sm:$0xff]
    %v522 = vld [vmem:[#allocation7 + $0xf0] sm:$0xff]
    %v523 = vld [vmem:[#allocation7 + $0xf8] sm:$0xff]
    %v524 = vld [vmem:[%s6] sm:$0x3]
    %v526 = vlaneseq
    %v527 = vshrl.u32 %v526, 7
    %v528 = vsub.s32 0, %v527
    %v529 = vrot.slane %v524, %v528
    %v530 = vlaneseq
    %v531 = vshrl.u32 %v530, 7
    %v532 = vsub.s32 1, %v531
    %v533 = vrot.slane %v524, %v532
    %v568 = vunpack.c.l.b16 %v492
    %v569 = vunpack.c.h.b16 %v492
    %v570 = vunpack.c.l.b16 %v493
    %v571 = vunpack.c.h.b16 %v493
    %v572 = vunpack.c.l.b16 %v494
    %v573 = vunpack.c.h.b16 %v494
    %v574 = vunpack.c.l.b16 %v495
    %v575 = vunpack.c.h.b16 %v495
    %v576 = vunpack.c.l.b16 %v496
    %v577 = vunpack.c.h.b16 %v496
    %v578 = vunpack.c.l.b16 %v497
    %v579 = vunpack.c.h.b16 %v497
    %v580 = vunpack.c.l.b16 %v498
    %v581 = vunpack.c.h.b16 %v498
    %v582 = vunpack.c.l.b16 %v499
    %v583 = vunpack.c.h.b16 %v499
    %v584 = vunpack.c.l.b16 %v500
    %v585 = vunpack.c.h.b16 %v500
    %v586 = vunpack.c.l.b16 %v501
    %v587 = vunpack.c.h.b16 %v501
    %v588 = vunpack.c.l.b16 %v502
    %v589 = vunpack.c.h.b16 %v502
    %v590 = vunpack.c.l.b16 %v503
    %v591 = vunpack.c.h.b16 %v503
    %v592 = vunpack.c.l.b16 %v504
    %v593 = vunpack.c.h.b16 %v504
    %v594 = vunpack.c.l.b16 %v505
    %v595 = vunpack.c.h.b16 %v505
    %v596 = vunpack.c.l.b16 %v506
    %v597 = vunpack.c.h.b16 %v506
    %v598 = vunpack.c.l.b16 %v507
    %v599 = vunpack.c.h.b16 %v507
    %v600 = vunpack.c.l.b16 %v508
    %v601 = vunpack.c.h.b16 %v508
    %v602 = vunpack.c.l.b16 %v509
    %v603 = vunpack.c.h.b16 %v509
    %v604 = vunpack.c.l.b16 %v510
    %v605 = vunpack.c.h.b16 %v510
    %v606 = vunpack.c.l.b16 %v511
    %v607 = vunpack.c.h.b16 %v511
    %v608 = vunpack.c.l.b16 %v512
    %v609 = vunpack.c.h.b16 %v512
    %v610 = vunpack.c.l.b16 %v513
    %v611 = vunpack.c.h.b16 %v513
    %v612 = vunpack.c.l.b16 %v514
    %v613 = vunpack.c.h.b16 %v514
    %v614 = vunpack.c.l.b16 %v515
    %v615 = vunpack.c.h.b16 %v515
    %v616 = vunpack.c.l.b16 %v516
    %v617 = vunpack.c.h.b16 %v516
    %v618 = vunpack.c.l.b16 %v517
    %v619 = vunpack.c.h.b16 %v517
    %v620 = vunpack.c.l.b16 %v518
    %v621 = vunpack.c.h.b16 %v518
    %v622 = vunpack.c.l.b16 %v519
    %v623 = vunpack.c.h.b16 %v519
    %v624 = vunpack.c.l.b16 %v520
    %v625 = vunpack.c.h.b16 %v520
    %v626 = vunpack.c.l.b16 %v521
    %v627 = vunpack.c.h.b16 %v521
    %v628 = vunpack.c.l.b16 %v522
    %v629 = vunpack.c.h.b16 %v522
    %v630 = vunpack.c.l.b16 %v523
    %v631 = vunpack.c.h.b16 %v523
    %v632 = vpack.c.b16 %v570, %v568
    %v633 = vpack.c.b16 %v571, %v569
    %v634 = vpack.c.b16 %v574, %v572
    %v635 = vpack.c.b16 %v575, %v573
    %v636 = vpack.c.b16 %v578, %v576
    %v637 = vpack.c.b16 %v579, %v577
    %v638 = vpack.c.b16 %v582, %v580
    %v639 = vpack.c.b16 %v583, %v581
    %v640 = vpack.c.b16 %v586, %v584
    %v641 = vpack.c.b16 %v587, %v585
    %v642 = vpack.c.b16 %v590, %v588
    %v643 = vpack.c.b16 %v591, %v589
    %v644 = vpack.c.b16 %v594, %v592
    %v645 = vpack.c.b16 %v595, %v593
    %v646 = vpack.c.b16 %v598, %v596
    %v647 = vpack.c.b16 %v599, %v597
    %v648 = vpack.c.b16 %v602, %v600
    %v649 = vpack.c.b16 %v603, %v601
    %v650 = vpack.c.b16 %v606, %v604
    %v651 = vpack.c.b16 %v607, %v605
    %v652 = vpack.c.b16 %v610, %v608
    %v653 = vpack.c.b16 %v611, %v609
    %v654 = vpack.c.b16 %v614, %v612
    %v655 = vpack.c.b16 %v615, %v613
    %v656 = vpack.c.b16 %v618, %v616
    %v657 = vpack.c.b16 %v619, %v617
    %v658 = vpack.c.b16 %v622, %v620
    %v659 = vpack.c.b16 %v623, %v621
    %v660 = vpack.c.b16 %v626, %v624
    %v661 = vpack.c.b16 %v627, %v625
    %v662 = vpack.c.b16 %v630, %v628
    %v663 = vpack.c.b16 %v631, %v629
    %696 = vmatprep.subr.bf16.mxu0 %v647
    %697 = vmatpush1.bf16.msra.mxu0 %v646
    %698 = vmatprep.subr.bf16.mxu0 %v645
    %699 = vmatpush1.bf16.msra.mxu0 %v644
    %700 = vmatprep.subr.bf16.mxu0 %v643
    %701 = vmatpush1.bf16.msra.mxu0 %v642
    %702 = vmatprep.subr.bf16.mxu0 %v641
    %703 = vmatpush1.bf16.msra.mxu0 %v640
    %704 = vmatprep.subr.bf16.mxu0 %v639
    %705 = vmatpush1.bf16.msra.mxu0 %v638
    %706 = vmatprep.subr.bf16.mxu0 %v637
    %707 = vmatpush1.bf16.msra.mxu0 %v636
    %708 = vmatprep.subr.bf16.mxu0 %v635
    %709 = vmatpush1.bf16.msra.mxu0 %v634
    %710 = vmatprep.subr.bf16.mxu0 %v633
    %711 = vmatpush1.bf16.msra.mxu0 %v632
    %712 = vmatprep.subr.bf16.mxu0 %v663
    %713 = vmatpush2.bf16.msra.mxu0 %v662
    %714 = vmatprep.subr.bf16.mxu0 %v661
    %715 = vmatpush2.bf16.msra.mxu0 %v660
    %716 = vmatprep.subr.bf16.mxu0 %v659
    %717 = vmatpush2.bf16.msra.mxu0 %v658
    %718 = vmatprep.subr.bf16.mxu0 %v657
    %719 = vmatpush2.bf16.msra.mxu0 %v656
    %720 = vmatprep.subr.bf16.mxu0 %v655
    %721 = vmatpush2.bf16.msra.mxu0 %v654
    %722 = vmatprep.subr.bf16.mxu0 %v653
    %723 = vmatpush2.bf16.msra.mxu0 %v652
    %724 = vmatprep.subr.bf16.mxu0 %v651
    %725 = vmatpush2.bf16.msra.mxu0 %v650
    %726 = vmatprep.subr.bf16.mxu0 %v649
    %727 = vmatpush2.bf16.msra.mxu0 %v648
    %728 = vmatprep.mubr.bf16.mxu0 %v491
    %729 = vmatmul.mubr.bf16.gmra.mxu0 %v490
    %v730 = vpop.f32.mrf.mxu0
    %v731 = vadd.f32 %v529, %v730
    %v732 = vpop.f32.mrf.mxu0
    %v733 = vadd.f32 %v533, %v732
    %v734 = vpop.f32.mrf.mxu0
    %v735 = vpop.f32.mrf.mxu0
    %736 = vdwg.mxu0
    %v737 = vmax.f32 %v731, 0.0
    %v738 = vmax.f32 %v733, 0.0
    %v739 = vpack.c.bf16 %v737, %v737
    %v740 = vpack.c.bf16 %v738, %v738
    %v741 = vld [vmem:[#allocation8] sm:$0xf]
    %v742 = vld [vmem:[#allocation8 + $0x4] sm:$0xf]
    %v743 = vld [vmem:[#allocation8 + $0x8] sm:$0xf]
    %v744 = vld [vmem:[#allocation8 + $0xc] sm:$0xf]
    %v745 = vld [vmem:[#allocation8 + $0x10] sm:$0xf]
    %v746 = vld [vmem:[#allocation8 + $0x14] sm:$0xf]
    %v747 = vld [vmem:[#allocation8 + $0x18] sm:$0xf]
    %v748 = vld [vmem:[#allocation8 + $0x1c] sm:$0xf]
    %v749 = vld [vmem:[#allocation8 + $0x20] sm:$0xf]
    %v750 = vld [vmem:[#allocation8 + $0x24] sm:$0xf]
    %v751 = vld [vmem:[#allocation8 + $0x28] sm:$0xf]
    %v752 = vld [vmem:[#allocation8 + $0x2c] sm:$0xf]
    %v753 = vld [vmem:[#allocation8 + $0x30] sm:$0xf]
    %v754 = vld [vmem:[#allocation8 + $0x34] sm:$0xf]
    %v755 = vld [vmem:[#allocation8 + $0x38] sm:$0xf]
    %v756 = vld [vmem:[#allocation8 + $0x3c] sm:$0xf]
    %v757 = vld [vmem:[#allocation8 + $0x40] sm:$0xf]
    %v758 = vld [vmem:[#allocation8 + $0x44] sm:$0xf]
    %v759 = vld [vmem:[#allocation8 + $0x48] sm:$0xf]
    %v760 = vld [vmem:[#allocation8 + $0x4c] sm:$0xf]
    %v761 = vld [vmem:[#allocation8 + $0x50] sm:$0xf]
    %v762 = vld [vmem:[#allocation8 + $0x54] sm:$0xf]
    %v763 = vld [vmem:[#allocation8 + $0x58] sm:$0xf]
    %v764 = vld [vmem:[#allocation8 + $0x5c] sm:$0xf]
    %v765 = vld [vmem:[#allocation8 + $0x60] sm:$0xf]
    %v766 = vld [vmem:[#allocation8 + $0x64] sm:$0xf]
    %v767 = vld [vmem:[#allocation8 + $0x68] sm:$0xf]
    %v768 = vld [vmem:[#allocation8 + $0x6c] sm:$0xf]
    %v769 = vld [vmem:[#allocation8 + $0x70] sm:$0xf]
    %v770 = vld [vmem:[#allocation8 + $0x74] sm:$0xf]
    %v771 = vld [vmem:[#allocation8 + $0x78] sm:$0xf]
    %v772 = vld [vmem:[#allocation8 + $0x7c] sm:$0xf]
    %v773 = vld [vmem:[%s8] sm:$0x1]
    %v775 = vlaneseq
    %v776 = vshrl.u32 %v775, 7
    %v777 = vsub.s32 0, %v776
    %v778 = vrot.slane %v773, %v777
    %v812 = vunpack.c.l.b16 %v741
    %v813 = vunpack.c.l.b16 %v742
    %v814 = vunpack.c.l.b16 %v743
    %v815 = vunpack.c.l.b16 %v744
    %v816 = vunpack.c.l.b16 %v745
    %v817 = vunpack.c.l.b16 %v746
    %v818 = vunpack.c.l.b16 %v747
    %v819 = vunpack.c.l.b16 %v748
    %v820 = vunpack.c.l.b16 %v749
    %v821 = vunpack.c.l.b16 %v750
    %v822 = vunpack.c.l.b16 %v751
    %v823 = vunpack.c.l.b16 %v752
    %v824 = vunpack.c.l.b16 %v753
    %v825 = vunpack.c.l.b16 %v754
    %v826 = vunpack.c.l.b16 %v755
    %v827 = vunpack.c.l.b16 %v756
    %v828 = vunpack.c.l.b16 %v757
    %v829 = vunpack.c.l.b16 %v758
    %v830 = vunpack.c.l.b16 %v759
    %v831 = vunpack.c.l.b16 %v760
    %v832 = vunpack.c.l.b16 %v761
    %v833 = vunpack.c.l.b16 %v762
    %v834 = vunpack.c.l.b16 %v763
    %v835 = vunpack.c.l.b16 %v764
    %v836 = vunpack.c.l.b16 %v765
    %v837 = vunpack.c.l.b16 %v766
    %v838 = vunpack.c.l.b16 %v767
    %v839 = vunpack.c.l.b16 %v768
    %v840 = vunpack.c.l.b16 %v769
    %v841 = vunpack.c.l.b16 %v770
    %v842 = vunpack.c.l.b16 %v771
    %v843 = vunpack.c.l.b16 %v772
    %v844 = vpack.c.b16 %v813, %v812
    %v845 = vpack.c.b16 %v815, %v814
    %v846 = vpack.c.b16 %v817, %v816
    %v847 = vpack.c.b16 %v819, %v818
    %v848 = vpack.c.b16 %v821, %v820
    %v849 = vpack.c.b16 %v823, %v822
    %v850 = vpack.c.b16 %v825, %v824
    %v851 = vpack.c.b16 %v827, %v826
    %v852 = vpack.c.b16 %v829, %v828
    %v853 = vpack.c.b16 %v831, %v830
    %v854 = vpack.c.b16 %v833, %v832
    %v855 = vpack.c.b16 %v835, %v834
    %v856 = vpack.c.b16 %v837, %v836
    %v857 = vpack.c.b16 %v839, %v838
    %v858 = vpack.c.b16 %v841, %v840
    %v859 = vpack.c.b16 %v843, %v842
    %876 = vmatprep.subr.bf16.mxu0 0
    %877 = vmatpush1.bf16.msra.mxu0 %v851
    %878 = vmatprep.subr.bf16.mxu0 0
    %879 = vmatpush1.bf16.msra.mxu0 %v850
    %880 = vmatprep.subr.bf16.mxu0 0
    %881 = vmatpush1.bf16.msra.mxu0 %v849
    %882 = vmatprep.subr.bf16.mxu0 0
    %883 = vmatpush1.bf16.msra.mxu0 %v848
    %884 = vmatprep.subr.bf16.mxu0 0
    %885 = vmatpush1.bf16.msra.mxu0 %v847
    %886 = vmatprep.subr.bf16.mxu0 0
    %887 = vmatpush1.bf16.msra.mxu0 %v846
    %888 = vmatprep.subr.bf16.mxu0 0
    %889 = vmatpush1.bf16.msra.mxu0 %v845
    %890 = vmatprep.subr.bf16.mxu0 0
    %891 = vmatpush1.bf16.msra.mxu0 %v844
    %892 = vmatprep.subr.bf16.mxu0 0
    %893 = vmatpush2.bf16.msra.mxu0 %v859
    %894 = vmatprep.subr.bf16.mxu0 0
    %895 = vmatpush2.bf16.msra.mxu0 %v858
    %896 = vmatprep.subr.bf16.mxu0 0
    %897 = vmatpush2.bf16.msra.mxu0 %v857
    %898 = vmatprep.subr.bf16.mxu0 0
    %899 = vmatpush2.bf16.msra.mxu0 %v856
    %900 = vmatprep.subr.bf16.mxu0 0
    %901 = vmatpush2.bf16.msra.mxu0 %v855
    %902 = vmatprep.subr.bf16.mxu0 0
    %903 = vmatpush2.bf16.msra.mxu0 %v854
    %904 = vmatprep.subr.bf16.mxu0 0
    %905 = vmatpush2.bf16.msra.mxu0 %v853
    %906 = vmatprep.subr.bf16.mxu0 0
    %907 = vmatpush2.bf16.msra.mxu0 %v852
    %908 = vmatprep.mubr.bf16.mxu0 %v740
    %909 = vmatmul.mubr.bf16.gmra.mxu0 %v739
    %v910 = vpop.f32.mrf.mxu0
    %v911 = vadd.f32 %v778, %v910
    %v912 = vpop.f32.mrf.mxu0
    %v913 = vpop.f32.mrf.mxu0
    %v914 = vpop.f32.mrf.mxu0
    %915 = vdwg.mxu0
    %916 = vst [vmem:[#allocation10] sm:$0xff] %v911
    // Predicated region
    $region54: #{neuralnet_forward.1} parent=1 // pred_check
      _
    $region55: #{neuralnet_forward.1} parent=1 // pred_check_branch
      %918 = sbr.rel (0) target = $region57
    $region56: #{neuralnet_forward.1} parent=1 // pred_region
      %s920 = ssub.s32 128, 128
      %921 = vsyncadd [#allocation4], %s920
      %s923 = sshll.u32 [#allocation10], 4
      %s924 = int_to_ptr.vmem [resolvable:$true] %s923
      %926 = dma.vmem_to_hbm [thread:$0]  %s924, 128, %s9, [#allocation4]
    $region57: #{neuralnet_forward.1} parent=1 // pred_fallthru
      _
    // Predicated region
    $region58: #{neuralnet_forward.1} parent=1 // pred_check
      _
    $region59: #{neuralnet_forward.1} parent=1 // pred_check_branch
      %928 = sbr.rel (0) target = $region61
    $region60: #{neuralnet_forward.1} parent=1 // pred_region
      %929 = dma.done [#allocation4], 128
    $region61: #{neuralnet_forward.1} parent=1 // pred_fallthru
      _
    %930 = vsyncpa [#allocation3], 1
    %931 = vsyncpa [#allocation6], 1
    %932 = vsyncpa [#allocation9], 1
    %933 = vsyncpa [#allocation4], 1

</llo_original>
